<compile_context>
chip_gen: v7x
topology: tpu7x:2x2x1
jax: 0.10.0
libtpu: 0.0.40
codegen_flags: <defaults>
</compile_context>

<pallas_src>
import jax
import jax.numpy as jnp
from jax.experimental import pallas as pl
from jax.experimental.pallas import tpu as pltpu


def _round_up(x, m):
    return (x + m - 1) // m * m


def _vmem_capacity_bytes():
    """Physical per-core VMEM (64 MiB on v7x, 128 MiB on v5e/v6e)."""
    try:
        return int(pltpu.get_tpu_info().vmem_capacity_bytes)
    except Exception:
        return 64 << 20  # conservative fallback, safe on every generation


def _const_spec(shape, single_buffer):
    """Spec for an input whose index_map is constant (DMA'd once, resident)."""
    index_map = lambda i, k: (0, 0)
    if single_buffer:
        try:
            return pl.BlockSpec(shape, index_map, pipeline_mode=pl.Buffered(1))
        except TypeError:  # pallas version without pipeline_mode kwarg
            pass
    return pl.BlockSpec(shape, index_map)


def _two_mlp_head_kernel(x_ref, w1_ref, b1_ref, w2_ref, b2_ref, o_ref, acc_ref):
    k = pl.program_id(1)

    @pl.when(k == 0)
    def _init():
        # Seed the accumulator with the fc1 bias -> no bias add in the epilogue.
        acc_ref[...] = jnp.broadcast_to(b1_ref[...], acc_ref.shape)

    # fc1 partial product for this K tile: cast the streamed x tile to the
    # matmul dtype on the VPU (hidden under the MXU); f32 accumulation.
    acc_ref[...] += jnp.dot(x_ref[...].astype(w1_ref.dtype), w1_ref[...],
                            preferred_element_type=jnp.float32)

    @pl.when(k == pl.num_programs(1) - 1)
    def _finalize():
        h = jnp.maximum(acc_ref[...], 0.0)                 # fc1 ReLU (f32)
        y = jnp.dot(h.astype(w2_ref.dtype), w2_ref[...],   # fc2 on resident w2
                    preferred_element_type=jnp.float32)
        o_ref[...] = jnp.maximum(y + b2_ref[...], 0.0).astype(o_ref.dtype)


def make_two_mlp_head(w1, b1, w2, b2, *, tm=None, tk=None,
                      matmul_dtype=jnp.bfloat16, interpret=False):
    """Build the ROI-head forward fn.  Parameter cast/pad happens once, here.

    w1: (D, R), w2: (R, R) in (in, out) layout (torch Linear weights
    transposed); b1, b2: (R,) or (1, R).  The returned forward(x) computes
    relu(relu(flatten(x) @ w1 + b1) @ w2 + b2).
    """
    d, r = w1.shape
    assert w2.shape == (r, r), w2.shape

    cap = _vmem_capacity_bytes()
    budget = int(cap * 0.70)        # tile-selection budget
    vmem_ceiling = int(cap * 0.75)  # never claim full VMEM (compiler headroom)

    # ---- K tile: large so each w1 DMA is multi-MB and grid-step count is low.
    if tk is None:
        tk = min(2048, _round_up(d, 128))
    tk = max(128, _round_up(tk, 128))
    d_pad = _round_up(d, tk)

    mm_bytes = jnp.dtype(matmul_dtype).itemsize

    # ---- one-time parameter prep (hoisted out of the per-call path) ----
    w1p = jnp.pad(jnp.asarray(w1, matmul_dtype), ((0, d_pad - d), (0, 0)))
    w2p = jnp.asarray(w2, matmul_dtype)
    b1p = jnp.asarray(b1, jnp.float32).reshape(1, r)
    b2p = jnp.asarray(b2, jnp.float32).reshape(1, r)

    def _vmem_need(tm_, x_bytes, out_bytes):
        return (2 * tm_ * tk * x_bytes       # x tiles (double-buffered)
                + 2 * tk * r * mm_bytes      # w1 tiles (double-buffered)
                + r * r * mm_bytes           # w2 (resident, single buffer)
                + 4 * r * 4                  # b1, b2 (f32)
                + 2 * tm_ * r * out_bytes    # output tile
                + tm_ * r * 4)               # f32 accumulator scratch

    def forward(x):
        n = x.shape[0]
        d_in = 1
        for s in x.shape[1:]:
            d_in *= s
        assert d_in == d, (x.shape, d)
        out_dtype = x.dtype
        x_bytes = jnp.dtype(x.dtype).itemsize
        out_bytes = jnp.dtype(out_dtype).itemsize

        # ---- row tile: as large as fits so w1 is streamed from HBM ~once.
        # For large N this still yields >=2 row tiles, which "parallel" lets
        # v7x's two TensorCores split.
        # TODO(synk): use pltpu.CORE_PARALLEL on the i axis for explicit 2-TC
        # sharding on v7x once generation detection is wired in.
        tm_ = tm if tm is not None else min(512, _round_up(n, 8))
        tm_ = max(8, _round_up(tm_, 8))
        while _vmem_need(tm_, x_bytes, out_bytes) > budget and tm_ > 8:
            tm_ = max(8, _round_up(tm_ // 2, 8))

        n_pad = _round_up(max(n, tm_), tm_)
        grid = (n_pad // tm_, d_pad // tk)

        x2d = x.reshape(n, d)                                  # torch .flatten(1)
        if (n_pad, d_pad) != (n, d):
            x2d = jnp.pad(x2d, ((0, n_pad - n), (0, d_pad - d)))

        need = _vmem_need(tm_, x_bytes, out_bytes)
        vmem_limit = int(max(16 << 20, min(need + (4 << 20), vmem_ceiling)))

        cost = pl.CostEstimate(
            flops=2 * n_pad * (d_pad + r) * r,
            transcendentals=0,
            bytes_accessed=(n_pad * d_pad * x_bytes               # x
                            + grid[0] * d_pad * r * mm_bytes      # w1 re-read / row tile
                            + r * r * mm_bytes + 2 * r * 4        # w2, biases
                            + n_pad * r * out_bytes),             # output
        )

        def _run(single_buffer_consts):
            return pl.pallas_call(
                _two_mlp_head_kernel,
                out_shape=jax.ShapeDtypeStruct((n_pad, r), out_dtype),
                grid_spec=pltpu.PrefetchScalarGridSpec(
                    num_scalar_prefetch=0,
                    grid=grid,
                    in_specs=[
                        pl.BlockSpec((tm_, tk), lambda i, k: (i, k)),  # x (stream)
                        pl.BlockSpec((tk, r), lambda i, k: (k, 0)),    # w1 (stream)
                        _const_spec((1, r), single_buffer_consts),     # b1 (resident)
                        _const_spec((r, r), single_buffer_consts),     # w2 (resident)
                        _const_spec((1, r), single_buffer_consts),     # b2 (resident)
                    ],
                    out_specs=pl.BlockSpec((tm_, r), lambda i, k: (i, 0)),
                    scratch_shapes=[pltpu.VMEM((tm_, r), jnp.float32)],
                ),
                compiler_params=pltpu.CompilerParams(
                    dimension_semantics=("parallel", "arbitrary"),
                    vmem_limit_bytes=vmem_limit,
                ),
                cost_estimate=cost,
                interpret=interpret,
            )(x2d, w1p, b1p, w2p, b2p)

        try:
            out = _run(True)
        except Exception:
            # Fallback if single-buffered (Buffered(1)) constant specs are not
            # supported by this pallas build; semantics are identical.
            out = _run(False)

        return out[:n]

    return forward


def two_mlp_head(x, w1, b1, w2, b2, **kwargs):
    """One-shot convenience wrapper (parameters prepped per call)."""
    return make_two_mlp_head(w1, b1, w2, b2, **kwargs)(x)


if __name__ == "__main__":
    # Small shapes consistent with the module: ROI-pooled features (N, C, H, W),
    # num_in_pixels = C*H*W = D, representation_size = R.
    N, C, H, W = 8, 4, 8, 8
    D = C * H * W                    # 256
    R = 128

    key = jax.random.PRNGKey(0)
    kx, k1, kb1, k2, kb2 = jax.random.split(key, 5)

    x = jax.random.normal(kx, (N, C, H, W), dtype=jnp.float32)
    # Deterministic synthetic parameters (not a checkpoint load).
    w1 = jax.random.normal(k1, (D, R), dtype=jnp.float32) * 0.05
    b1 = jax.random.normal(kb1, (R,), dtype=jnp.float32) * 0.05
    w2 = jax.random.normal(k2, (R, R), dtype=jnp.float32) * 0.05
    b2 = jax.random.normal(kb2, (R,), dtype=jnp.float32) * 0.05

    # tk=128 so the demo exercises the K-reduction / accumulator path (2 steps).
    head = make_two_mlp_head(w1, b1, w2, b2, tk=128)
    out = jax.block_until_ready(head(x))

    # Pure-JAX reference with the same bf16 matmul-input quantization the
    # kernel uses (f32 accumulation, f32 epilogue).
    xq = x.reshape(N, D).astype(jnp.bfloat16)
    h = jnp.maximum(
        jnp.dot(xq, w1.astype(jnp.bfloat16),
                preferred_element_type=jnp.float32) + b1[None, :], 0.0)
    ref = jnp.maximum(
        jnp.dot(h.astype(jnp.bfloat16), w2.astype(jnp.bfloat16),
                preferred_element_type=jnp.float32) + b2[None, :], 0.0)

    assert out.shape == (N, R), out.shape
    assert out.dtype == x.dtype
    assert jnp.allclose(out, ref, atol=2e-3, rtol=2e-3)

    print("KERNEL_OK")
</pallas_src>

<mosaic_0001>
module attributes {stable_mosaic.version = 11 : i64} {
  func.func @_two_mlp_head_kernel(%arg0: i32, %arg1: i32, %arg2: memref<8x128xf32, #tpu.memory_space<vmem>>, %arg3: memref<128x128xbf16, #tpu.memory_space<vmem>>, %arg4: memref<1x128xf32, #tpu.memory_space<vmem>>, %arg5: memref<128x128xbf16, #tpu.memory_space<vmem>>, %arg6: memref<1x128xf32, #tpu.memory_space<vmem>>, %arg7: memref<8x128xf32, #tpu.memory_space<vmem>>, %arg8: memref<8x128xf32, #tpu.memory_space<vmem>>) attributes {dimension_semantics = [#tpu.dimension_semantics<parallel>, #tpu.dimension_semantics<arbitrary>], iteration_bounds = array<i64: 1, 2>, scalar_prefetch = 0 : i64, scratch_operands = 1 : i64, tpu.core_type = #tpu.core_type<tc>, window_params = [{transform_indices = @transform_0, window_bounds = array<i64: 8, 128>}, {transform_indices = @transform_1, window_bounds = array<i64: 128, 128>}, {pipeline_mode = #tpu.pipeline_mode<synchronous>, transform_indices = @transform_2, window_bounds = array<i64: 1, 128>}, {pipeline_mode = #tpu.pipeline_mode<synchronous>, transform_indices = @transform_3, window_bounds = array<i64: 128, 128>}, {pipeline_mode = #tpu.pipeline_mode<synchronous>, transform_indices = @transform_4, window_bounds = array<i64: 1, 128>}, {transform_indices = @transform_5, window_bounds = array<i64: 8, 128>}]} {
    %c0_i32 = arith.constant 0 : i32
    %0 = arith.cmpi eq, %arg1, %c0_i32 : i32
    %1 = arith.extui %0 : i1 to i32
    %c0_i32_0 = arith.constant 0 : i32
    %2 = arith.cmpi ne, %1, %c0_i32_0 : i32
    scf.if %2 {
      %c0_9 = arith.constant 0 : index
      %c0_10 = arith.constant 0 : index
      %13 = vector.load %arg4[%c0_9, %c0_10] : memref<1x128xf32, #tpu.memory_space<vmem>>, vector<1x128xf32>
      %14 = vector.shape_cast %13 : vector<1x128xf32> to vector<1x128xf32>
      %15 = vector.broadcast %14 : vector<1x128xf32> to vector<8x128xf32>
      %c0_11 = arith.constant 0 : index
      %c0_12 = arith.constant 0 : index
      %16 = vector.load %arg8[%c0_11, %c0_12] : memref<8x128xf32, #tpu.memory_space<vmem>>, vector<8x128xf32>
      tpu.vector_store %arg8[%c0_11, %c0_12], %15 {strides = array<i32>} : memref<8x128xf32, #tpu.memory_space<vmem>>, vector<8x128xf32>,
    } else {
    }
    %c0 = arith.constant 0 : index
    %c0_1 = arith.constant 0 : index
    %3 = vector.load %arg8[%c0, %c0_1] : memref<8x128xf32, #tpu.memory_space<vmem>>, vector<8x128xf32>
    %c0_2 = arith.constant 0 : index
    %c0_3 = arith.constant 0 : index
    %4 = vector.load %arg2[%c0_2, %c0_3] : memref<8x128xf32, #tpu.memory_space<vmem>>, vector<8x128xf32>
    %5 = arith.truncf %4 : vector<8x128xf32> to vector<8x128xbf16>
    %c0_4 = arith.constant 0 : index
    %c0_5 = arith.constant 0 : index
    %6 = vector.load %arg3[%c0_4, %c0_5] : memref<128x128xbf16, #tpu.memory_space<vmem>>, vector<128x128xbf16>
    %cst = arith.constant dense<0.000000e+00> : vector<8x128xf32>
    %7 = tpu.matmul %5, %6, %cst {dimension_numbers = #tpu.dot_dimension_numbers<[1], [0], [0], [1], [0, 0, 1, 1], [], []>} : vector<8x128xbf16>, vector<128x128xbf16>, vector<8x128xf32> -> vector<8x128xf32>
    %8 = arith.addf %3, %7 : vector<8x128xf32>
    %c0_6 = arith.constant 0 : index
    %c0_7 = arith.constant 0 : index
    %9 = vector.load %arg8[%c0_6, %c0_7] : memref<8x128xf32, #tpu.memory_space<vmem>>, vector<8x128xf32>
    tpu.vector_store %arg8[%c0_6, %c0_7], %8 {strides = array<i32>} : memref<8x128xf32, #tpu.memory_space<vmem>>, vector<8x128xf32>,
    %c1_i32 = arith.constant 1 : i32
    %10 = arith.cmpi eq, %arg1, %c1_i32 : i32
    %11 = arith.extui %10 : i1 to i32
    %c0_i32_8 = arith.constant 0 : i32
    %12 = arith.cmpi ne, %11, %c0_i32_8 : i32
    scf.if %12 {
      %c0_9 = arith.constant 0 : index
      %c0_10 = arith.constant 0 : index
      %13 = vector.load %arg8[%c0_9, %c0_10] : memref<8x128xf32, #tpu.memory_space<vmem>>, vector<8x128xf32>
      %cst_11 = arith.constant 0.000000e+00 : f32
      %14 = vector.broadcast %cst_11 : f32 to vector<8x128xf32>
      %15 = arith.maximumf %13, %14 : vector<8x128xf32>
      %16 = arith.truncf %15 : vector<8x128xf32> to vector<8x128xbf16>
      %c0_12 = arith.constant 0 : index
      %c0_13 = arith.constant 0 : index
      %17 = vector.load %arg5[%c0_12, %c0_13] : memref<128x128xbf16, #tpu.memory_space<vmem>>, vector<128x128xbf16>
      %cst_14 = arith.constant dense<0.000000e+00> : vector<8x128xf32>
      %18 = tpu.matmul %16, %17, %cst_14 {dimension_numbers = #tpu.dot_dimension_numbers<[1], [0], [0], [1], [0, 0, 1, 1], [], []>} : vector<8x128xbf16>, vector<128x128xbf16>, vector<8x128xf32> -> vector<8x128xf32>
      %c0_15 = arith.constant 0 : index
      %c0_16 = arith.constant 0 : index
      %19 = vector.load %arg6[%c0_15, %c0_16] : memref<1x128xf32, #tpu.memory_space<vmem>>, vector<1x128xf32>
      %20 = vector.broadcast %19 : vector<1x128xf32> to vector<8x128xf32>
      %21 = arith.addf %18, %20 : vector<8x128xf32>
      %cst_17 = arith.constant 0.000000e+00 : f32
      %22 = vector.broadcast %cst_17 : f32 to vector<8x128xf32>
      %23 = arith.maximumf %21, %22 : vector<8x128xf32>
      %c0_18 = arith.constant 0 : index
      %c0_19 = arith.constant 0 : index
      %24 = vector.load %arg7[%c0_18, %c0_19] : memref<8x128xf32, #tpu.memory_space<vmem>>, vector<8x128xf32>
      tpu.vector_store %arg7[%c0_18, %c0_19], %23 {strides = array<i32>} : memref<8x128xf32, #tpu.memory_space<vmem>>, vector<8x128xf32>,
    } else {
    }
    return
  }
  func.func @transform_0(%arg0: i32, %arg1: i32) -> (i32, i32) {
    %c0_i32 = arith.constant 0 : i32
    return %arg0, %arg1 : i32, i32
  }
  func.func @transform_1(%arg0: i32, %arg1: i32) -> (i32, i32) {
    %c0_i32 = arith.constant 0 : i32
    %c0_i32_0 = arith.constant 0 : i32
    return %arg1, %c0_i32 : i32, i32
  }
  func.func @transform_2(%arg0: i32, %arg1: i32) -> (i32, i32) {
    %c0_i32 = arith.constant 0 : i32
    %c0_i32_0 = arith.constant 0 : i32
    %c0_i32_1 = arith.constant 0 : i32
    return %c0_i32, %c0_i32_0 : i32, i32
  }
  func.func @transform_3(%arg0: i32, %arg1: i32) -> (i32, i32) {
    %c0_i32 = arith.constant 0 : i32
    %c0_i32_0 = arith.constant 0 : i32
    %c0_i32_1 = arith.constant 0 : i32
    return %c0_i32, %c0_i32_0 : i32, i32
  }
  func.func @transform_4(%arg0: i32, %arg1: i32) -> (i32, i32) {
    %c0_i32 = arith.constant 0 : i32
    %c0_i32_0 = arith.constant 0 : i32
    %c0_i32_1 = arith.constant 0 : i32
    return %c0_i32, %c0_i32_0 : i32, i32
  }
  func.func @transform_5(%arg0: i32, %arg1: i32) -> (i32, i32) {
    %c0_i32 = arith.constant 0 : i32
    %c0_i32_0 = arith.constant 0 : i32
    return %arg0, %c0_i32 : i32, i32
  }
}

module attributes {stable_mosaic.version = 11 : i64} {
  func.func @_two_mlp_head_kernel(%arg0: i32, %arg1: i32, %arg2: memref<8x128xf32, #tpu.memory_space<vmem>>, %arg3: memref<128x128xbf16, #tpu.memory_space<vmem>>, %arg4: memref<1x128xf32, #tpu.memory_space<vmem>>, %arg5: memref<128x128xbf16, #tpu.memory_space<vmem>>, %arg6: memref<1x128xf32, #tpu.memory_space<vmem>>, %arg7: memref<8x128xf32, #tpu.memory_space<vmem>>, %arg8: memref<8x128xf32, #tpu.memory_space<vmem>>) attributes {dimension_semantics = [#tpu.dimension_semantics<parallel>, #tpu.dimension_semantics<arbitrary>], iteration_bounds = array<i64: 1, 2>, scalar_prefetch = 0 : i64, scratch_operands = 1 : i64, tpu.core_type = #tpu.core_type<tc>, window_params = [{transform_indices = @transform_0, window_bounds = array<i64: 8, 128>}, {transform_indices = @transform_1, window_bounds = array<i64: 128, 128>}, {pipeline_mode = #tpu.pipeline_mode<synchronous>, transform_indices = @transform_2, window_bounds = array<i64: 1, 128>}, {pipeline_mode = #tpu.pipeline_mode<synchronous>, transform_indices = @transform_3, window_bounds = array<i64: 128, 128>}, {pipeline_mode = #tpu.pipeline_mode<synchronous>, transform_indices = @transform_4, window_bounds = array<i64: 1, 128>}, {transform_indices = @transform_5, window_bounds = array<i64: 8, 128>}]} {
    %c0_i32 = arith.constant 0 : i32
    %0 = arith.cmpi eq, %arg1, %c0_i32 : i32
    %1 = arith.extui %0 : i1 to i32
    %c0_i32_0 = arith.constant 0 : i32
    %2 = arith.cmpi ne, %1, %c0_i32_0 : i32
    scf.if %2 {
      %c0_9 = arith.constant 0 : index
      %c0_10 = arith.constant 0 : index
      %13 = vector.load %arg4[%c0_9, %c0_10] : memref<1x128xf32, #tpu.memory_space<vmem>>, vector<1x128xf32>
      %14 = vector.shape_cast %13 : vector<1x128xf32> to vector<1x128xf32>
      %15 = vector.broadcast %14 : vector<1x128xf32> to vector<8x128xf32>
      %c0_11 = arith.constant 0 : index
      %c0_12 = arith.constant 0 : index
      %16 = vector.load %arg8[%c0_11, %c0_12] : memref<8x128xf32, #tpu.memory_space<vmem>>, vector<8x128xf32>
      tpu.vector_store %arg8[%c0_11, %c0_12], %15 {strides = array<i32>} : memref<8x128xf32, #tpu.memory_space<vmem>>, vector<8x128xf32>,
    } else {
    }
    %c0 = arith.constant 0 : index
    %c0_1 = arith.constant 0 : index
    %3 = vector.load %arg8[%c0, %c0_1] : memref<8x128xf32, #tpu.memory_space<vmem>>, vector<8x128xf32>
    %c0_2 = arith.constant 0 : index
    %c0_3 = arith.constant 0 : index
    %4 = vector.load %arg2[%c0_2, %c0_3] : memref<8x128xf32, #tpu.memory_space<vmem>>, vector<8x128xf32>
    %5 = arith.truncf %4 : vector<8x128xf32> to vector<8x128xbf16>
    %c0_4 = arith.constant 0 : index
    %c0_5 = arith.constant 0 : index
    %6 = vector.load %arg3[%c0_4, %c0_5] : memref<128x128xbf16, #tpu.memory_space<vmem>>, vector<128x128xbf16>
    %cst = arith.constant dense<0.000000e+00> : vector<8x128xf32>
    %7 = tpu.matmul %5, %6, %cst {dimension_numbers = #tpu.dot_dimension_numbers<[1], [0], [0], [1], [0, 0, 1, 1], [], []>} : vector<8x128xbf16>, vector<128x128xbf16>, vector<8x128xf32> -> vector<8x128xf32>
    %8 = arith.addf %3, %7 : vector<8x128xf32>
    %c0_6 = arith.constant 0 : index
    %c0_7 = arith.constant 0 : index
    %9 = vector.load %arg8[%c0_6, %c0_7] : memref<8x128xf32, #tpu.memory_space<vmem>>, vector<8x128xf32>
    tpu.vector_store %arg8[%c0_6, %c0_7], %8 {strides = array<i32>} : memref<8x128xf32, #tpu.memory_space<vmem>>, vector<8x128xf32>,
    %c1_i32 = arith.constant 1 : i32
    %10 = arith.cmpi eq, %arg1, %c1_i32 : i32
    %11 = arith.extui %10 : i1 to i32
    %c0_i32_8 = arith.constant 0 : i32
    %12 = arith.cmpi ne, %11, %c0_i32_8 : i32
    scf.if %12 {
      %c0_9 = arith.constant 0 : index
      %c0_10 = arith.constant 0 : index
      %13 = vector.load %arg8[%c0_9, %c0_10] : memref<8x128xf32, #tpu.memory_space<vmem>>, vector<8x128xf32>
      %cst_11 = arith.constant 0.000000e+00 : f32
      %14 = vector.broadcast %cst_11 : f32 to vector<8x128xf32>
      %15 = arith.maximumf %13, %14 : vector<8x128xf32>
      %16 = arith.truncf %15 : vector<8x128xf32> to vector<8x128xbf16>
      %c0_12 = arith.constant 0 : index
      %c0_13 = arith.constant 0 : index
      %17 = vector.load %arg5[%c0_12, %c0_13] : memref<128x128xbf16, #tpu.memory_space<vmem>>, vector<128x128xbf16>
      %cst_14 = arith.constant dense<0.000000e+00> : vector<8x128xf32>
      %18 = tpu.matmul %16, %17, %cst_14 {dimension_numbers = #tpu.dot_dimension_numbers<[1], [0], [0], [1], [0, 0, 1, 1], [], []>} : vector<8x128xbf16>, vector<128x128xbf16>, vector<8x128xf32> -> vector<8x128xf32>
      %c0_15 = arith.constant 0 : index
      %c0_16 = arith.constant 0 : index
      %19 = vector.load %arg6[%c0_15, %c0_16] : memref<1x128xf32, #tpu.memory_space<vmem>>, vector<1x128xf32>
      %20 = vector.broadcast %19 : vector<1x128xf32> to vector<8x128xf32>
      %21 = arith.addf %18, %20 : vector<8x128xf32>
      %cst_17 = arith.constant 0.000000e+00 : f32
      %22 = vector.broadcast %cst_17 : f32 to vector<8x128xf32>
      %23 = arith.maximumf %21, %22 : vector<8x128xf32>
      %c0_18 = arith.constant 0 : index
      %c0_19 = arith.constant 0 : index
      %24 = vector.load %arg7[%c0_18, %c0_19] : memref<8x128xf32, #tpu.memory_space<vmem>>, vector<8x128xf32>
      tpu.vector_store %arg7[%c0_18, %c0_19], %23 {strides = array<i32>} : memref<8x128xf32, #tpu.memory_space<vmem>>, vector<8x128xf32>,
    } else {
    }
    return
  }
  func.func @transform_0(%arg0: i32, %arg1: i32) -> (i32, i32) {
    %c0_i32 = arith.constant 0 : i32
    return %arg0, %arg1 : i32, i32
  }
  func.func @transform_1(%arg0: i32, %arg1: i32) -> (i32, i32) {
    %c0_i32 = arith.constant 0 : i32
    %c0_i32_0 = arith.constant 0 : i32
    return %arg1, %c0_i32 : i32, i32
  }
  func.func @transform_2(%arg0: i32, %arg1: i32) -> (i32, i32) {
    %c0_i32 = arith.constant 0 : i32
    %c0_i32_0 = arith.constant 0 : i32
    %c0_i32_1 = arith.constant 0 : i32
    return %c0_i32, %c0_i32_0 : i32, i32
  }
  func.func @transform_3(%arg0: i32, %arg1: i32) -> (i32, i32) {
    %c0_i32 = arith.constant 0 : i32
    %c0_i32_0 = arith.constant 0 : i32
    %c0_i32_1 = arith.constant 0 : i32
    return %c0_i32, %c0_i32_0 : i32, i32
  }
  func.func @transform_4(%arg0: i32, %arg1: i32) -> (i32, i32) {
    %c0_i32 = arith.constant 0 : i32
    %c0_i32_0 = arith.constant 0 : i32
    %c0_i32_1 = arith.constant 0 : i32
    return %c0_i32, %c0_i32_0 : i32, i32
  }
  func.func @transform_5(%arg0: i32, %arg1: i32) -> (i32, i32) {
    %c0_i32 = arith.constant 0 : i32
    %c0_i32_0 = arith.constant 0 : i32
    return %arg0, %c0_i32 : i32, i32
  }
}

</mosaic_0001>

<llo_original>
// kernel: tpu_custom_call.1
$region0: #{tpu_custom_call.1}
  #allocation0 [shape = 'u32[]', space=smem, size = 0x4, offset = 0x4, fixed_abs, tag = 'smem constant byte address 0x4 - core index']
  #allocation1 [shape = 'u32[144,128]{1,0:T(1,128)}', space=vmem, size = 0x12000, scoped, tag = 'internal scratch']
  #allocation2 [shape = 'f32[8,128]{1,0:T(8,128)}', space=vmem, size = 0x1000, scoped, tag = 'scratch operand']
  %s0 = inlined_call_operand.hbm [shape: f32[8,256], index: 0, kind: input, shape index: {}]
  %s1 = inlined_call_operand.hbm [shape: bf16[256,128], index: 1, kind: input, shape index: {}]
  %s2 = inlined_call_operand.vmem [shape: f32[1,128], index: 2, kind: input, shape index: {}]
  %s3 = inlined_call_operand.hbm [shape: bf16[128,128], index: 3, kind: input, shape index: {}]
  %s4 = inlined_call_operand.vmem [shape: f32[1,128], index: 4, kind: input, shape index: {}]
  %s5 = inlined_call_operand.hbm [shape: f32[8,128], index: 5, kind: output, shape index: {}]
  %s6 = sld [smem:[#allocation0]]
  $region73: #{tpu_custom_call.1} parent=0
    _
  %s8 = ssub.s32 1, %s6
  %s9 = scalar_select 0, %s8, %s6
  $region1: #{tpu_custom_call.1} parent=0
    #allocation3 [shape = 'u8[8192]{0}', space=vmem, size = 0x2000, scoped, tag = 'input window, operand 0']
    #allocation4 [shape = 's32[2]{0}', space=sflag, size = 0x8, scoped, tag = 'scoped memory for tpu_custom_call.1']
    #allocation5 [shape = 's32[2]{0}', space=sflag, size = 0x8, scoped, tag = 'scoped memory for tpu_custom_call.1']
    #allocation6 [shape = 'u8[65536]{0}', space=vmem, size = 0x10000, scoped, tag = 'input window, operand 1']
    #allocation7 [shape = 's32[2]{0}', space=sflag, size = 0x8, scoped, tag = 'scoped memory for tpu_custom_call.1']
    #allocation8 [shape = 'u8[32768]{0}', space=vmem, size = 0x8000, scoped, tag = 'input window, operand 3, single buffered']
    #allocation9 [shape = 'u8[4096]{0}', space=vmem, size = 0x1000, scoped, tag = 'output window, operand 0, single buffered']
    %10 = vsyncpa [#allocation4], 0
    %s11 = scalar_lea.sflag [#allocation4], 1
    %12 = vsyncpa %s11, 0
    %13 = vsyncpa [#allocation7], 0
    %s14 = scalar_lea.sflag [#allocation7], 1
    %15 = vsyncpa %s14, 0
    %16 = vsyncpa [#allocation5], 0
    loop: start=0, step=1, limit=4
    $region2: #{tpu_custom_call.1} parent=1 // loop_pre_header
      _
    $region3: #{tpu_custom_call.1} parent=1 // loop_header
      %s18 = sphi 0, %s22
      %p19 = scmp.ge.s32.totalorder %s18, 4
      %s25 = sphi 0, %s37
      %s26 = sphi 0, %s33
      %s27 = sphi 0, %s25
      %s28 = sphi 0, %s26
      %s29 = sphi 0, %s27
      %s30 = sphi 0, %s28
      %s42 = sphi 0, %s44
      %s45 = sphi 0, %s42
      %s46 = sphi 0, %s45
      %s62 = sphi 0, %s46
      %s68 = sphi 0, %s70
      %s71 = sphi 0, %s68
      %s72 = sphi 0, %s71
      %s88 = sphi 0, %s72
      %s92 = sphi 0, %s92
      %s94 = sphi 0, %s92
      %s95 = sphi 0, %s94
      %s109 = sphi 0, %s95
      %s113 = sphi 0, %s113
      %s115 = sphi 0, %s113
      %s116 = sphi 0, %s115
      %s130 = sphi 0, %s116
      %s134 = sphi 0, %s134
      %s136 = sphi 0, %s134
      %s137 = sphi 0, %s136
      %s151 = sphi 0, %s137
      %s157 = sphi 0, %s159
      %s160 = sphi 0, %s157
      %s161 = sphi 0, %s160
      %s177 = sphi 0, %s161
    $region4: #{tpu_custom_call.1} parent=1 // loop_header_branch
      %21 = sbr.rel (%p19) target = $region8
    $region5: #{tpu_custom_call.1} parent=1 // loop_body
      %s23 = ssub.s32 %s18, 1
      %s24 = ssub.s32 %s18, 2
      %s31 = sadd.s32 1, %s26
      %p32 = scmp.ge.s32.totalorder %s31, 2
      %s33 = scalar_select %p32, 0, %s31
      %s34 = sadd.s32 1, %s25
      %s35 = scalar_select %p32, %s34, %s25
      %p36 = scmp.ge.s32.totalorder %s35, 1
      %s37 = scalar_select %p36, 0, %s35
      %s38 = ssub.s32 %s25, %s37
      %s39 = ssub.s32 %s26, %s33
      %s40 = sor.u32 %s38, %s39
      %p41 = scmp.eq.s32.totalorder %s40, 0
      %s43 = sadd.s32 %s42, 1
      %s44 = scalar_select %p41, %s42, %s43
      %p47 = pneg %p41
      %p48 = scmp.eq.s32.totalorder %s18, 1
      %p49 = por %p47, %p48
      %p50 = scmp.ne.s32.totalorder %s42, %s45
      %p51 = scmp.eq.s32.totalorder %s18, 0
      %p52 = por %p50, %p51
      %p53 = scmp.ne.s32.totalorder %s42, %s45
      %p54 = scmp.eq.s32.totalorder %s23, 1
      %p55 = por %p53, %p54
      %p56 = scmp.ne.s32.totalorder %s45, %s46
      %p57 = scmp.eq.s32.totalorder %s23, 0
      %p58 = por %p56, %p57
      %p59 = scmp.ne.s32.totalorder %s45, %s46
      %p60 = scmp.eq.s32.totalorder %s24, 1
      %p61 = por %p59, %p60
      %p63 = scmp.ne.s32.totalorder %s46, %s62
      %p64 = scmp.eq.s32.totalorder %s24, 0
      %p65 = por %p63, %p64
      %s66 = ssub.s32 %s26, %s33
      %p67 = scmp.eq.s32.totalorder %s66, 0
      %s69 = sadd.s32 %s68, 1
      %s70 = scalar_select %p67, %s68, %s69
      %p73 = pneg %p67
      %p74 = scmp.eq.s32.totalorder %s18, 1
      %p75 = por %p73, %p74
      %p76 = scmp.ne.s32.totalorder %s68, %s71
      %p77 = scmp.eq.s32.totalorder %s18, 0
      %p78 = por %p76, %p77
      %p79 = scmp.ne.s32.totalorder %s68, %s71
      %p80 = scmp.eq.s32.totalorder %s23, 1
      %p81 = por %p79, %p80
      %p82 = scmp.ne.s32.totalorder %s71, %s72
      %p83 = scmp.eq.s32.totalorder %s23, 0
      %p84 = por %p82, %p83
      %p85 = scmp.ne.s32.totalorder %s71, %s72
      %p86 = scmp.eq.s32.totalorder %s24, 1
      %p87 = por %p85, %p86
      %p89 = scmp.ne.s32.totalorder %s72, %s88
      %p90 = scmp.eq.s32.totalorder %s24, 0
      %p91 = por %p89, %p90
      %s93 = sadd.s32 %s92, 1
      %p96 = scmp.eq.s32.totalorder %s18, 1
      %p97 = scmp.ne.s32.totalorder %s92, %s94
      %p98 = scmp.eq.s32.totalorder %s18, 0
      %p99 = por %p97, %p98
      %p100 = scmp.ne.s32.totalorder %s92, %s94
      %p101 = scmp.eq.s32.totalorder %s23, 1
      %p102 = por %p100, %p101
      %p103 = scmp.ne.s32.totalorder %s94, %s95
      %p104 = scmp.eq.s32.totalorder %s23, 0
      %p105 = por %p103, %p104
      %p106 = scmp.ne.s32.totalorder %s94, %s95
      %p107 = scmp.eq.s32.totalorder %s24, 1
      %p108 = por %p106, %p107
      %p110 = scmp.ne.s32.totalorder %s95, %s109
      %p111 = scmp.eq.s32.totalorder %s24, 0
      %p112 = por %p110, %p111
      %s114 = sadd.s32 %s113, 1
      %p117 = scmp.eq.s32.totalorder %s18, 1
      %p118 = scmp.ne.s32.totalorder %s113, %s115
      %p119 = scmp.eq.s32.totalorder %s18, 0
      %p120 = por %p118, %p119
      %p121 = scmp.ne.s32.totalorder %s113, %s115
      %p122 = scmp.eq.s32.totalorder %s23, 1
      %p123 = por %p121, %p122
      %p124 = scmp.ne.s32.totalorder %s115, %s116
      %p125 = scmp.eq.s32.totalorder %s23, 0
      %p126 = por %p124, %p125
      %p127 = scmp.ne.s32.totalorder %s115, %s116
      %p128 = scmp.eq.s32.totalorder %s24, 1
      %p129 = por %p127, %p128
      %p131 = scmp.ne.s32.totalorder %s116, %s130
      %p132 = scmp.eq.s32.totalorder %s24, 0
      %p133 = por %p131, %p132
      %s135 = sadd.s32 %s134, 1
      %p138 = scmp.eq.s32.totalorder %s18, 1
      %p139 = scmp.ne.s32.totalorder %s134, %s136
      %p140 = scmp.eq.s32.totalorder %s18, 0
      %p141 = por %p139, %p140
      %p142 = scmp.ne.s32.totalorder %s134, %s136
      %p143 = scmp.eq.s32.totalorder %s23, 1
      %p144 = por %p142, %p143
      %p145 = scmp.ne.s32.totalorder %s136, %s137
      %p146 = scmp.eq.s32.totalorder %s23, 0
      %p147 = por %p145, %p146
      %p148 = scmp.ne.s32.totalorder %s136, %s137
      %p149 = scmp.eq.s32.totalorder %s24, 1
      %p150 = por %p148, %p149
      %p152 = scmp.ne.s32.totalorder %s137, %s151
      %p153 = scmp.eq.s32.totalorder %s24, 0
      %p154 = por %p152, %p153
      %s155 = ssub.s32 %s25, %s37
      %p156 = scmp.eq.s32.totalorder %s155, 0
      %s158 = sadd.s32 %s157, 1
      %s159 = scalar_select %p156, %s157, %s158
      %p162 = pneg %p156
      %p163 = scmp.eq.s32.totalorder %s18, 1
      %p164 = por %p162, %p163
      %p165 = scmp.ne.s32.totalorder %s157, %s160
      %p166 = scmp.eq.s32.totalorder %s18, 0
      %p167 = por %p165, %p166
      %p168 = scmp.ne.s32.totalorder %s157, %s160
      %p169 = scmp.eq.s32.totalorder %s23, 1
      %p170 = por %p168, %p169
      %p171 = scmp.ne.s32.totalorder %s160, %s161
      %p172 = scmp.eq.s32.totalorder %s23, 0
      %p173 = por %p171, %p172
      %p174 = scmp.ne.s32.totalorder %s160, %s161
      %p175 = scmp.eq.s32.totalorder %s24, 1
      %p176 = por %p174, %p175
      %p178 = scmp.ne.s32.totalorder %s161, %s177
      %p179 = scmp.eq.s32.totalorder %s24, 0
      %p180 = por %p178, %p179
      %p181 = scmp.le.s32.totalorder 1, %s18
      %p182 = scmp.lt.s32.totalorder %s18, 3
      %p183 = pnand %p181, %p182
      %p184 = pneg %p183
      // Predicated region
      $region9: #{tpu_custom_call.1} parent=5 // pred_check
        _
      $region10: #{tpu_custom_call.1} parent=5 // pred_check_branch
        %186 = sbr.rel (%p183) target = $region12
      $region11: #{tpu_custom_call.1} parent=5 // pred_region
        %s187 = ssub.s32 %s18, 1
        // Predicated region
        $region13: #{tpu_custom_call.1} parent=11 // pred_check
          %p188 = pneg %p105
        $region14: #{tpu_custom_call.1} parent=11 // pred_check_branch
          %190 = sbr.rel (%p188) target = $region16
        $region15: #{tpu_custom_call.1} parent=11 // pred_region
          _
        $region16: #{tpu_custom_call.1} parent=11 // pred_fallthru
          _
        // Predicated region
        $region17: #{tpu_custom_call.1} parent=11 // pred_check
          %p191 = pneg %p126
        $region18: #{tpu_custom_call.1} parent=11 // pred_check_branch
          %193 = sbr.rel (%p191) target = $region20
        $region19: #{tpu_custom_call.1} parent=11 // pred_region
          %s195 = ssub.s32 1024, 1024
          %196 = vsyncadd [#allocation7], %s195
          %s197 = sshll.u32 [#allocation8], 4
          %s198 = int_to_ptr.vmem [resolvable:$true] %s197
          %203 = dma.hbm_to_vmem [thread:$0]  %s3, 1024, %s198, [#allocation7], 64, 64, 4
        $region20: #{tpu_custom_call.1} parent=11 // pred_fallthru
          _
        // Predicated region
        $region21: #{tpu_custom_call.1} parent=11 // pred_check
          %p204 = pneg %p147
        $region22: #{tpu_custom_call.1} parent=11 // pred_check_branch
          %206 = sbr.rel (%p204) target = $region24
        $region23: #{tpu_custom_call.1} parent=11 // pred_region
          _
        $region24: #{tpu_custom_call.1} parent=11 // pred_fallthru
          _
      $region12: #{tpu_custom_call.1} parent=5 // pred_fallthru
        _
      %p207 = scmp.lt.s32.totalorder %s18, 2
      // Predicated region
      $region25: #{tpu_custom_call.1} parent=5 // pred_check
        %p208 = pneg %p207
      $region26: #{tpu_custom_call.1} parent=5 // pred_check_branch
        %210 = sbr.rel (%p208) target = $region28
      $region27: #{tpu_custom_call.1} parent=5 // pred_region
        // Predicated region
        $region29: #{tpu_custom_call.1} parent=27 // pred_check
          %p211 = pneg %p52
        $region30: #{tpu_custom_call.1} parent=27 // pred_check_branch
          %213 = sbr.rel (%p211) target = $region32
        $region31: #{tpu_custom_call.1} parent=27 // pred_region
          %s214 = sand.u32 %s42, 1
          %s215 = scalar_lea.sflag [#allocation4], %s214
          %s216 = sand.u32 %s42, 1
          %s217 = smul.addr %s216, 8
          %s218 = scalar_lea.vmem [#allocation3], %s217
          %s220 = ssub.s32 128, 128
          %221 = vsyncadd %s215, %s220
          %s222 = smul.addr %s25, 2
          %s223 = sadd.s32 %s26, %s222
          %s224 = smul.addr %s223, 128
          %s225 = scalar_lea.hbm %s0, %s224
          %s227 = sshll.u32 %s218, 4
          %s228 = int_to_ptr.vmem [resolvable:$true] %s227
          %230 = dma.hbm_to_vmem [thread:$0]  %s225, 128, %s228, %s215
        $region32: #{tpu_custom_call.1} parent=27 // pred_fallthru
          _
        // Predicated region
        $region33: #{tpu_custom_call.1} parent=27 // pred_check
          %p231 = pneg %p78
        $region34: #{tpu_custom_call.1} parent=27 // pred_check_branch
          %233 = sbr.rel (%p231) target = $region36
        $region35: #{tpu_custom_call.1} parent=27 // pred_region
          %s234 = sand.u32 %s18, 1
          %s235 = scalar_lea.sflag [#allocation7], %s234
          %s236 = sand.u32 %s68, 1
          %s237 = smul.addr %s236, 64
          %s238 = scalar_lea.vmem [#allocation6], %s237
          %s239 = smul.u32 16, %s26
          %s241 = ssub.s32 1024, 1024
          %242 = vsyncadd %s235, %s241
          %s243 = smul.addr %s239, 64
          %s244 = scalar_lea.hbm %s1, %s243
          %s245 = sshll.u32 %s238, 4
          %s246 = int_to_ptr.vmem [resolvable:$true] %s245
          %251 = dma.hbm_to_vmem [thread:$0]  %s244, 1024, %s246, %s235, 64, 64, 4
        $region36: #{tpu_custom_call.1} parent=27 // pred_fallthru
          _
      $region28: #{tpu_custom_call.1} parent=5 // pred_fallthru
        _
      %p252 = scmp.le.s32.totalorder 1, %s18
      %p253 = scmp.lt.s32.totalorder %s18, 3
      %p254 = pnand %p252, %p253
      %p255 = pneg %p254
      // Predicated region
      $region37: #{tpu_custom_call.1} parent=5 // pred_check
        _
      $region38: #{tpu_custom_call.1} parent=5 // pred_check_branch
        %257 = sbr.rel (%p254) target = $region40
      $region39: #{tpu_custom_call.1} parent=5 // pred_region
        %s258 = ssub.s32 %s18, 1
        %s259 = sand.u32 %s45, 1
        %s260 = scalar_lea.sflag [#allocation4], %s259
        %s261 = sand.u32 %s45, 1
        %s262 = smul.addr %s261, 8
        %s263 = scalar_lea.vmem [#allocation3], %s262
        // Predicated region
        $region41: #{tpu_custom_call.1} parent=39 // pred_check
          %p264 = pneg %p58
        $region42: #{tpu_custom_call.1} parent=39 // pred_check_branch
          %266 = sbr.rel (%p264) target = $region44
        $region43: #{tpu_custom_call.1} parent=39 // pred_region
          %267 = dma.done %s260, 128
        $region44: #{tpu_custom_call.1} parent=39 // pred_fallthru
          _
        %s268 = sand.u32 %s23, 1
        %s269 = scalar_lea.sflag [#allocation7], %s268
        %s270 = sand.u32 %s71, 1
        %s271 = smul.addr %s270, 64
        %s272 = scalar_lea.vmem [#allocation6], %s271
        // Predicated region
        $region45: #{tpu_custom_call.1} parent=39 // pred_check
          %p273 = pneg %p84
        $region46: #{tpu_custom_call.1} parent=39 // pred_check_branch
          %275 = sbr.rel (%p273) target = $region48
        $region47: #{tpu_custom_call.1} parent=39 // pred_region
          %276 = dma.done %s269, 1024
        $region48: #{tpu_custom_call.1} parent=39 // pred_fallthru
          _
        // Predicated region
        $region49: #{tpu_custom_call.1} parent=39 // pred_check
          %p277 = pneg %p126
        $region50: #{tpu_custom_call.1} parent=39 // pred_check_branch
          %279 = sbr.rel (%p277) target = $region52
        $region51: #{tpu_custom_call.1} parent=39 // pred_region
          %280 = dma.done [#allocation7], 1024
        $region52: #{tpu_custom_call.1} parent=39 // pred_fallthru
          _
        %s281 = sand.u32 %s45, 1
        %s282 = scalar_lea.sflag [#allocation4], %s281
        %s283 = sand.u32 %s45, 1
        %s284 = smul.addr %s283, 8
        %s285 = scalar_lea.vmem [#allocation3], %s284
        %p286 = pneg %p58
        %p287 = pneg %p55
        %s288 = sand.u32 %s23, 1
        %s289 = scalar_lea.sflag [#allocation7], %s288
        %s290 = sand.u32 %s71, 1
        %s291 = smul.addr %s290, 64
        %s292 = scalar_lea.vmem [#allocation6], %s291
        %p293 = pneg %p84
        %p294 = pneg %p81
        %p295 = pneg %p105
        %p296 = pneg %p102
        %p297 = pneg %p126
        %p298 = pneg %p123
        %p299 = pneg %p147
        %p300 = pneg %p144
        %p301 = pneg %p173
        %p302 = pneg %p170
        %s303 = smul.u32 16, %s28
        %p305 = scmp.eq.s32.totalorder %s28, 0
        // Predicated region
        $region53: #{tpu_custom_call.1} parent=39 // pred_check
          %p306 = pneg %p305
        $region54: #{tpu_custom_call.1} parent=39 // pred_check_branch
          %308 = sbr.rel (%p306) target = $region56
        $region55: #{tpu_custom_call.1} parent=39 // pred_region
          %v309 = vld [vmem:[%s2] sm:$0x1]
          %v311 = vlaneseq
          %v312 = vshrl.u32 %v311, 7
          %v313 = vsub.s32 0, %v312
          %v314 = vrot.slane %v309, %v313
          %316 = vst [vmem:[#allocation2] sm:$0xff] %v314
        $region56: #{tpu_custom_call.1} parent=39 // pred_fallthru
          _
        %v317 = vld [vmem:[#allocation2] sm:$0xff]
        %v318 = vld [vmem:[%s263] sm:$0xff]
        %v319 = vpack.c.bf16 %v318, %v318
        %v320 = vld [vmem:[%s272] sm:$0xf]
        %v321 = vld [vmem:[%s272 + $0x4] sm:$0xf]
        %v322 = vld [vmem:[%s272 + $0x8] sm:$0xf]
        %v323 = vld [vmem:[%s272 + $0xc] sm:$0xf]
        %v324 = vld [vmem:[%s272 + $0x10] sm:$0xf]
        %v325 = vld [vmem:[%s272 + $0x14] sm:$0xf]
        %v326 = vld [vmem:[%s272 + $0x18] sm:$0xf]
        %v327 = vld [vmem:[%s272 + $0x1c] sm:$0xf]
        %v328 = vld [vmem:[%s272 + $0x20] sm:$0xf]
        %v329 = vld [vmem:[%s272 + $0x24] sm:$0xf]
        %v330 = vld [vmem:[%s272 + $0x28] sm:$0xf]
        %v331 = vld [vmem:[%s272 + $0x2c] sm:$0xf]
        %v332 = vld [vmem:[%s272 + $0x30] sm:$0xf]
        %v333 = vld [vmem:[%s272 + $0x34] sm:$0xf]
        %v334 = vld [vmem:[%s272 + $0x38] sm:$0xf]
        %v335 = vld [vmem:[%s272 + $0x3c] sm:$0xf]
        %v352 = vunpack.c.l.b16 %v320
        %v353 = vunpack.c.l.b16 %v321
        %v354 = vunpack.c.l.b16 %v322
        %v355 = vunpack.c.l.b16 %v323
        %v356 = vunpack.c.l.b16 %v324
        %v357 = vunpack.c.l.b16 %v325
        %v358 = vunpack.c.l.b16 %v326
        %v359 = vunpack.c.l.b16 %v327
        %v360 = vunpack.c.l.b16 %v328
        %v361 = vunpack.c.l.b16 %v329
        %v362 = vunpack.c.l.b16 %v330
        %v363 = vunpack.c.l.b16 %v331
        %v364 = vunpack.c.l.b16 %v332
        %v365 = vunpack.c.l.b16 %v333
        %v366 = vunpack.c.l.b16 %v334
        %v367 = vunpack.c.l.b16 %v335
        %v368 = vpack.c.b16 %v353, %v352
        %v369 = vpack.c.b16 %v355, %v354
        %v370 = vpack.c.b16 %v357, %v356
        %v371 = vpack.c.b16 %v359, %v358
        %v372 = vpack.c.b16 %v361, %v360
        %v373 = vpack.c.b16 %v363, %v362
        %v374 = vpack.c.b16 %v365, %v364
        %v375 = vpack.c.b16 %v367, %v366
        %384 = vmatprep.subr.bf16.mxu0 0
        %385 = vmatpush1.bf16.msra.mxu0 %v368
        %386 = vmatprep.subr.bf16.mxu0 0
        %387 = vmatpush1.bf16.msra.mxu0 %v369
        %388 = vmatprep.subr.bf16.mxu0 0
        %389 = vmatpush1.bf16.msra.mxu0 %v370
        %390 = vmatprep.subr.bf16.mxu0 0
        %391 = vmatpush1.bf16.msra.mxu0 %v371
        %392 = vmatprep.subr.bf16.mxu0 0
        %393 = vmatpush1.bf16.msra.mxu0 %v372
        %394 = vmatprep.subr.bf16.mxu0 0
        %395 = vmatpush1.bf16.msra.mxu0 %v373
        %396 = vmatprep.subr.bf16.mxu0 0
        %397 = vmatpush1.bf16.msra.mxu0 %v374
        %398 = vmatprep.subr.bf16.mxu0 0
        %399 = vmatpush1.bf16.msra.mxu0 %v375
        %400 = vmatprep.subr.bf16.mxu0 0
        %401 = vmatpush1.bf16.msra.mxu0 0
        %402 = vmatprep.subr.bf16.mxu0 0
        %403 = vmatpush1.bf16.msra.mxu0 0
        %404 = vmatprep.subr.bf16.mxu0 0
        %405 = vmatpush1.bf16.msra.mxu0 0
        %406 = vmatprep.subr.bf16.mxu0 0
        %407 = vmatpush1.bf16.msra.mxu0 0
        %408 = vmatprep.subr.bf16.mxu0 0
        %409 = vmatpush1.bf16.msra.mxu0 0
        %410 = vmatprep.subr.bf16.mxu0 0
        %411 = vmatpush1.bf16.msra.mxu0 0
        %412 = vmatprep.subr.bf16.mxu0 0
        %413 = vmatpush1.bf16.msra.mxu0 0
        %414 = vmatprep.subr.bf16.mxu0 0
        %415 = vmatpush1.bf16.msra.mxu0 0
        %416 = vmatprep.mubr.bf16.mxu0 0
        %417 = vmatmul.mubr.bf16.gmra.mrb[0].mxu0 %v319
        %v418 = vpop.f32.mrb[0].mxu0
        %v419 = vadd.f32 0.0, %v418
        %v420 = vpop.f32.mrb[0].mxu0
        %v421 = vpop.f32.mrb[0].mxu0
        %v422 = vpop.f32.mrb[0].mxu0
        %423 = vdwg.mxu0
        %v424 = vadd.f32 %v317, %v419
        %425 = vst [vmem:[#allocation2] sm:$0xff] %v424
        %p426 = scmp.eq.s32.totalorder %s28, 1
        // Predicated region
        $region57: #{tpu_custom_call.1} parent=39 // pred_check
          %p427 = pneg %p426
        $region58: #{tpu_custom_call.1} parent=39 // pred_check_branch
          %429 = sbr.rel (%p427) target = $region60
        $region59: #{tpu_custom_call.1} parent=39 // pred_region
          %v430 = vld [vmem:[#allocation2] sm:$0xff]
          %v431 = vmax.f32 %v430, 0.0
          %v432 = vpack.c.bf16 %v431, %v431
          %v433 = vld [vmem:[#allocation8] sm:$0xf]
          %v434 = vld [vmem:[#allocation8 + $0x4] sm:$0xf]
          %v435 = vld [vmem:[#allocation8 + $0x8] sm:$0xf]
          %v436 = vld [vmem:[#allocation8 + $0xc] sm:$0xf]
          %v437 = vld [vmem:[#allocation8 + $0x10] sm:$0xf]
          %v438 = vld [vmem:[#allocation8 + $0x14] sm:$0xf]
          %v439 = vld [vmem:[#allocation8 + $0x18] sm:$0xf]
          %v440 = vld [vmem:[#allocation8 + $0x1c] sm:$0xf]
          %v441 = vld [vmem:[#allocation8 + $0x20] sm:$0xf]
          %v442 = vld [vmem:[#allocation8 + $0x24] sm:$0xf]
          %v443 = vld [vmem:[#allocation8 + $0x28] sm:$0xf]
          %v444 = vld [vmem:[#allocation8 + $0x2c] sm:$0xf]
          %v445 = vld [vmem:[#allocation8 + $0x30] sm:$0xf]
          %v446 = vld [vmem:[#allocation8 + $0x34] sm:$0xf]
          %v447 = vld [vmem:[#allocation8 + $0x38] sm:$0xf]
          %v448 = vld [vmem:[#allocation8 + $0x3c] sm:$0xf]
          %v449 = vld [vmem:[%s4] sm:$0x1]
          %v451 = vlaneseq
          %v452 = vshrl.u32 %v451, 7
          %v453 = vsub.s32 0, %v452
          %v454 = vrot.slane %v449, %v453
          %v472 = vunpack.c.l.b16 %v433
          %v473 = vunpack.c.l.b16 %v434
          %v474 = vunpack.c.l.b16 %v435
          %v475 = vunpack.c.l.b16 %v436
          %v476 = vunpack.c.l.b16 %v437
          %v477 = vunpack.c.l.b16 %v438
          %v478 = vunpack.c.l.b16 %v439
          %v479 = vunpack.c.l.b16 %v440
          %v480 = vunpack.c.l.b16 %v441
          %v481 = vunpack.c.l.b16 %v442
          %v482 = vunpack.c.l.b16 %v443
          %v483 = vunpack.c.l.b16 %v444
          %v484 = vunpack.c.l.b16 %v445
          %v485 = vunpack.c.l.b16 %v446
          %v486 = vunpack.c.l.b16 %v447
          %v487 = vunpack.c.l.b16 %v448
          %v488 = vpack.c.b16 %v473, %v472
          %v489 = vpack.c.b16 %v475, %v474
          %v490 = vpack.c.b16 %v477, %v476
          %v491 = vpack.c.b16 %v479, %v478
          %v492 = vpack.c.b16 %v481, %v480
          %v493 = vpack.c.b16 %v483, %v482
          %v494 = vpack.c.b16 %v485, %v484
          %v495 = vpack.c.b16 %v487, %v486
          %504 = vmatprep.subr.bf16.mxu0 0
          %505 = vmatpush1.bf16.msra.mxu0 %v488
          %506 = vmatprep.subr.bf16.mxu0 0
          %507 = vmatpush1.bf16.msra.mxu0 %v489
          %508 = vmatprep.subr.bf16.mxu0 0
          %509 = vmatpush1.bf16.msra.mxu0 %v490
          %510 = vmatprep.subr.bf16.mxu0 0
          %511 = vmatpush1.bf16.msra.mxu0 %v491
          %512 = vmatprep.subr.bf16.mxu0 0
          %513 = vmatpush1.bf16.msra.mxu0 %v492
          %514 = vmatprep.subr.bf16.mxu0 0
          %515 = vmatpush1.bf16.msra.mxu0 %v493
          %516 = vmatprep.subr.bf16.mxu0 0
          %517 = vmatpush1.bf16.msra.mxu0 %v494
          %518 = vmatprep.subr.bf16.mxu0 0
          %519 = vmatpush1.bf16.msra.mxu0 %v495
          %520 = vmatprep.subr.bf16.mxu0 0
          %521 = vmatpush1.bf16.msra.mxu0 0
          %522 = vmatprep.subr.bf16.mxu0 0
          %523 = vmatpush1.bf16.msra.mxu0 0
          %524 = vmatprep.subr.bf16.mxu0 0
          %525 = vmatpush1.bf16.msra.mxu0 0
          %526 = vmatprep.subr.bf16.mxu0 0
          %527 = vmatpush1.bf16.msra.mxu0 0
          %528 = vmatprep.subr.bf16.mxu0 0
          %529 = vmatpush1.bf16.msra.mxu0 0
          %530 = vmatprep.subr.bf16.mxu0 0
          %531 = vmatpush1.bf16.msra.mxu0 0
          %532 = vmatprep.subr.bf16.mxu0 0
          %533 = vmatpush1.bf16.msra.mxu0 0
          %534 = vmatprep.subr.bf16.mxu0 0
          %535 = vmatpush1.bf16.msra.mxu0 0
          %536 = vmatprep.mubr.bf16.mxu0 0
          %537 = vmatmul.mubr.bf16.gmra.mrb[0].mxu0 %v432
          %v538 = vpop.f32.mrb[0].mxu0
          %v539 = vadd.f32 %v454, %v538
          %v540 = vpop.f32.mrb[0].mxu0
          %v541 = vpop.f32.mrb[0].mxu0
          %v542 = vpop.f32.mrb[0].mxu0
          %543 = vdwg.mxu0
          %v544 = vmax.f32 %v539, 0.0
          %545 = vst [vmem:[#allocation9] sm:$0xff] %v544
        $region60: #{tpu_custom_call.1} parent=39 // pred_fallthru
          _
        // Predicated region
        $region61: #{tpu_custom_call.1} parent=39 // pred_check
          %p546 = pneg %p170
        $region62: #{tpu_custom_call.1} parent=39 // pred_check_branch
          %548 = sbr.rel (%p546) target = $region64
        $region63: #{tpu_custom_call.1} parent=39 // pred_region
          %s550 = ssub.s32 128, 128
          %551 = vsyncadd [#allocation5], %s550
          %s552 = smul.addr %s27, 128
          %s553 = scalar_lea.hbm %s5, %s552
          %s555 = sshll.u32 [#allocation9], 4
          %s556 = int_to_ptr.vmem [resolvable:$true] %s555
          %558 = dma.vmem_to_hbm [thread:$0]  %s556, 128, %s553, [#allocation5]
        $region64: #{tpu_custom_call.1} parent=39 // pred_fallthru
          _
        // Predicated region
        $region65: #{tpu_custom_call.1} parent=39 // pred_check
          %p559 = pneg %p170
        $region66: #{tpu_custom_call.1} parent=39 // pred_check_branch
          %561 = sbr.rel (%p559) target = $region68
        $region67: #{tpu_custom_call.1} parent=39 // pred_region
          %562 = dma.done [#allocation5], 128
        $region68: #{tpu_custom_call.1} parent=39 // pred_fallthru
          _
      $region40: #{tpu_custom_call.1} parent=5 // pred_fallthru
        _
      %p563 = scmp.le.s32.totalorder 2, %s18
      // Predicated region
      $region69: #{tpu_custom_call.1} parent=5 // pred_check
        %p564 = pneg %p563
      $region70: #{tpu_custom_call.1} parent=5 // pred_check_branch
        %566 = sbr.rel (%p564) target = $region72
      $region71: #{tpu_custom_call.1} parent=5 // pred_region
        %s567 = ssub.s32 %s18, 2
      $region72: #{tpu_custom_call.1} parent=5 // pred_fallthru
        _
    $region6: #{tpu_custom_call.1} parent=1 // loop_footer
      %s22 = sadd.s32 1, %s18
    $region7: #{tpu_custom_call.1} parent=1 // loop_footer_branch
      %17 = sbr.rel target = $region3
    $region8: #{tpu_custom_call.1} parent=1 // loop_exit
      _
    %568 = vsyncpa [#allocation4], 1
    %s569 = scalar_lea.sflag [#allocation4], 1
    %570 = vsyncpa %s569, 1
    %571 = vsyncpa [#allocation7], 1
    %s572 = scalar_lea.sflag [#allocation7], 1
    %573 = vsyncpa %s572, 1
    %574 = vsyncpa [#allocation5], 1
    %s575 = scalar_lea.sflag [#allocation5], 1
    %576 = vsyncpa %s575, 1

// kernel: tpu_custom_call.1
$region0: #{tpu_custom_call.1}
  #allocation0 [shape = 'u32[]', space=smem, size = 0x4, offset = 0x4, fixed_abs, tag = 'smem constant byte address 0x4 - core index']
  #allocation1 [shape = 'u32[144,128]{1,0:T(1,128)}', space=vmem, size = 0x12000, scoped, tag = 'internal scratch']
  #allocation2 [shape = 'f32[8,128]{1,0:T(8,128)}', space=vmem, size = 0x1000, scoped, tag = 'scratch operand']
  %s0 = inlined_call_operand.hbm [shape: f32[8,256], index: 0, kind: input, shape index: {}]
  %s1 = inlined_call_operand.hbm [shape: bf16[256,128], index: 1, kind: input, shape index: {}]
  %s2 = inlined_call_operand.vmem [shape: f32[1,128], index: 2, kind: input, shape index: {}]
  %s3 = inlined_call_operand.hbm [shape: bf16[128,128], index: 3, kind: input, shape index: {}]
  %s4 = inlined_call_operand.vmem [shape: f32[1,128], index: 4, kind: input, shape index: {}]
  %s5 = inlined_call_operand.hbm [shape: f32[8,128], index: 5, kind: output, shape index: {}]
  %s6 = sld [smem:[#allocation0]]
  $region73: #{tpu_custom_call.1} parent=0
    _
  %s8 = ssub.s32 1, %s6
  %s9 = scalar_select 0, %s8, %s6
  $region1: #{tpu_custom_call.1} parent=0
    #allocation3 [shape = 'u8[8192]{0}', space=vmem, size = 0x2000, scoped, tag = 'input window, operand 0']
    #allocation4 [shape = 's32[2]{0}', space=sflag, size = 0x8, scoped, tag = 'scoped memory for tpu_custom_call.1']
    #allocation5 [shape = 's32[2]{0}', space=sflag, size = 0x8, scoped, tag = 'scoped memory for tpu_custom_call.1']
    #allocation6 [shape = 'u8[65536]{0}', space=vmem, size = 0x10000, scoped, tag = 'input window, operand 1']
    #allocation7 [shape = 's32[2]{0}', space=sflag, size = 0x8, scoped, tag = 'scoped memory for tpu_custom_call.1']
    #allocation8 [shape = 'u8[32768]{0}', space=vmem, size = 0x8000, scoped, tag = 'input window, operand 3, single buffered']
    #allocation9 [shape = 'u8[4096]{0}', space=vmem, size = 0x1000, scoped, tag = 'output window, operand 0, single buffered']
    %10 = vsyncpa [#allocation4], 0
    %s11 = scalar_lea.sflag [#allocation4], 1
    %12 = vsyncpa %s11, 0
    %13 = vsyncpa [#allocation7], 0
    %s14 = scalar_lea.sflag [#allocation7], 1
    %15 = vsyncpa %s14, 0
    %16 = vsyncpa [#allocation5], 0
    loop: start=0, step=1, limit=4
    $region2: #{tpu_custom_call.1} parent=1 // loop_pre_header
      _
    $region3: #{tpu_custom_call.1} parent=1 // loop_header
      %s18 = sphi 0, %s22
      %p19 = scmp.ge.s32.totalorder %s18, 4
      %s25 = sphi 0, %s37
      %s26 = sphi 0, %s33
      %s27 = sphi 0, %s25
      %s28 = sphi 0, %s26
      %s29 = sphi 0, %s27
      %s30 = sphi 0, %s28
      %s42 = sphi 0, %s44
      %s45 = sphi 0, %s42
      %s46 = sphi 0, %s45
      %s62 = sphi 0, %s46
      %s68 = sphi 0, %s70
      %s71 = sphi 0, %s68
      %s72 = sphi 0, %s71
      %s88 = sphi 0, %s72
      %s92 = sphi 0, %s92
      %s94 = sphi 0, %s92
      %s95 = sphi 0, %s94
      %s109 = sphi 0, %s95
      %s113 = sphi 0, %s113
      %s115 = sphi 0, %s113
      %s116 = sphi 0, %s115
      %s130 = sphi 0, %s116
      %s134 = sphi 0, %s134
      %s136 = sphi 0, %s134
      %s137 = sphi 0, %s136
      %s151 = sphi 0, %s137
      %s157 = sphi 0, %s159
      %s160 = sphi 0, %s157
      %s161 = sphi 0, %s160
      %s177 = sphi 0, %s161
    $region4: #{tpu_custom_call.1} parent=1 // loop_header_branch
      %21 = sbr.rel (%p19) target = $region8
    $region5: #{tpu_custom_call.1} parent=1 // loop_body
      %s23 = ssub.s32 %s18, 1
      %s24 = ssub.s32 %s18, 2
      %s31 = sadd.s32 1, %s26
      %p32 = scmp.ge.s32.totalorder %s31, 2
      %s33 = scalar_select %p32, 0, %s31
      %s34 = sadd.s32 1, %s25
      %s35 = scalar_select %p32, %s34, %s25
      %p36 = scmp.ge.s32.totalorder %s35, 1
      %s37 = scalar_select %p36, 0, %s35
      %s38 = ssub.s32 %s25, %s37
      %s39 = ssub.s32 %s26, %s33
      %s40 = sor.u32 %s38, %s39
      %p41 = scmp.eq.s32.totalorder %s40, 0
      %s43 = sadd.s32 %s42, 1
      %s44 = scalar_select %p41, %s42, %s43
      %p47 = pneg %p41
      %p48 = scmp.eq.s32.totalorder %s18, 1
      %p49 = por %p47, %p48
      %p50 = scmp.ne.s32.totalorder %s42, %s45
      %p51 = scmp.eq.s32.totalorder %s18, 0
      %p52 = por %p50, %p51
      %p53 = scmp.ne.s32.totalorder %s42, %s45
      %p54 = scmp.eq.s32.totalorder %s23, 1
      %p55 = por %p53, %p54
      %p56 = scmp.ne.s32.totalorder %s45, %s46
      %p57 = scmp.eq.s32.totalorder %s23, 0
      %p58 = por %p56, %p57
      %p59 = scmp.ne.s32.totalorder %s45, %s46
      %p60 = scmp.eq.s32.totalorder %s24, 1
      %p61 = por %p59, %p60
      %p63 = scmp.ne.s32.totalorder %s46, %s62
      %p64 = scmp.eq.s32.totalorder %s24, 0
      %p65 = por %p63, %p64
      %s66 = ssub.s32 %s26, %s33
      %p67 = scmp.eq.s32.totalorder %s66, 0
      %s69 = sadd.s32 %s68, 1
      %s70 = scalar_select %p67, %s68, %s69
      %p73 = pneg %p67
      %p74 = scmp.eq.s32.totalorder %s18, 1
      %p75 = por %p73, %p74
      %p76 = scmp.ne.s32.totalorder %s68, %s71
      %p77 = scmp.eq.s32.totalorder %s18, 0
      %p78 = por %p76, %p77
      %p79 = scmp.ne.s32.totalorder %s68, %s71
      %p80 = scmp.eq.s32.totalorder %s23, 1
      %p81 = por %p79, %p80
      %p82 = scmp.ne.s32.totalorder %s71, %s72
      %p83 = scmp.eq.s32.totalorder %s23, 0
      %p84 = por %p82, %p83
      %p85 = scmp.ne.s32.totalorder %s71, %s72
      %p86 = scmp.eq.s32.totalorder %s24, 1
      %p87 = por %p85, %p86
      %p89 = scmp.ne.s32.totalorder %s72, %s88
      %p90 = scmp.eq.s32.totalorder %s24, 0
      %p91 = por %p89, %p90
      %s93 = sadd.s32 %s92, 1
      %p96 = scmp.eq.s32.totalorder %s18, 1
      %p97 = scmp.ne.s32.totalorder %s92, %s94
      %p98 = scmp.eq.s32.totalorder %s18, 0
      %p99 = por %p97, %p98
      %p100 = scmp.ne.s32.totalorder %s92, %s94
      %p101 = scmp.eq.s32.totalorder %s23, 1
      %p102 = por %p100, %p101
      %p103 = scmp.ne.s32.totalorder %s94, %s95
      %p104 = scmp.eq.s32.totalorder %s23, 0
      %p105 = por %p103, %p104
      %p106 = scmp.ne.s32.totalorder %s94, %s95
      %p107 = scmp.eq.s32.totalorder %s24, 1
      %p108 = por %p106, %p107
      %p110 = scmp.ne.s32.totalorder %s95, %s109
      %p111 = scmp.eq.s32.totalorder %s24, 0
      %p112 = por %p110, %p111
      %s114 = sadd.s32 %s113, 1
      %p117 = scmp.eq.s32.totalorder %s18, 1
      %p118 = scmp.ne.s32.totalorder %s113, %s115
      %p119 = scmp.eq.s32.totalorder %s18, 0
      %p120 = por %p118, %p119
      %p121 = scmp.ne.s32.totalorder %s113, %s115
      %p122 = scmp.eq.s32.totalorder %s23, 1
      %p123 = por %p121, %p122
      %p124 = scmp.ne.s32.totalorder %s115, %s116
      %p125 = scmp.eq.s32.totalorder %s23, 0
      %p126 = por %p124, %p125
      %p127 = scmp.ne.s32.totalorder %s115, %s116
      %p128 = scmp.eq.s32.totalorder %s24, 1
      %p129 = por %p127, %p128
      %p131 = scmp.ne.s32.totalorder %s116, %s130
      %p132 = scmp.eq.s32.totalorder %s24, 0
      %p133 = por %p131, %p132
      %s135 = sadd.s32 %s134, 1
      %p138 = scmp.eq.s32.totalorder %s18, 1
      %p139 = scmp.ne.s32.totalorder %s134, %s136
      %p140 = scmp.eq.s32.totalorder %s18, 0
      %p141 = por %p139, %p140
      %p142 = scmp.ne.s32.totalorder %s134, %s136
      %p143 = scmp.eq.s32.totalorder %s23, 1
      %p144 = por %p142, %p143
      %p145 = scmp.ne.s32.totalorder %s136, %s137
      %p146 = scmp.eq.s32.totalorder %s23, 0
      %p147 = por %p145, %p146
      %p148 = scmp.ne.s32.totalorder %s136, %s137
      %p149 = scmp.eq.s32.totalorder %s24, 1
      %p150 = por %p148, %p149
      %p152 = scmp.ne.s32.totalorder %s137, %s151
      %p153 = scmp.eq.s32.totalorder %s24, 0
      %p154 = por %p152, %p153
      %s155 = ssub.s32 %s25, %s37
      %p156 = scmp.eq.s32.totalorder %s155, 0
      %s158 = sadd.s32 %s157, 1
      %s159 = scalar_select %p156, %s157, %s158
      %p162 = pneg %p156
      %p163 = scmp.eq.s32.totalorder %s18, 1
      %p164 = por %p162, %p163
      %p165 = scmp.ne.s32.totalorder %s157, %s160
      %p166 = scmp.eq.s32.totalorder %s18, 0
      %p167 = por %p165, %p166
      %p168 = scmp.ne.s32.totalorder %s157, %s160
      %p169 = scmp.eq.s32.totalorder %s23, 1
      %p170 = por %p168, %p169
      %p171 = scmp.ne.s32.totalorder %s160, %s161
      %p172 = scmp.eq.s32.totalorder %s23, 0
      %p173 = por %p171, %p172
      %p174 = scmp.ne.s32.totalorder %s160, %s161
      %p175 = scmp.eq.s32.totalorder %s24, 1
      %p176 = por %p174, %p175
      %p178 = scmp.ne.s32.totalorder %s161, %s177
      %p179 = scmp.eq.s32.totalorder %s24, 0
      %p180 = por %p178, %p179
      %p181 = scmp.le.s32.totalorder 1, %s18
      %p182 = scmp.lt.s32.totalorder %s18, 3
      %p183 = pnand %p181, %p182
      %p184 = pneg %p183
      // Predicated region
      $region9: #{tpu_custom_call.1} parent=5 // pred_check
        _
      $region10: #{tpu_custom_call.1} parent=5 // pred_check_branch
        %186 = sbr.rel (%p183) target = $region12
      $region11: #{tpu_custom_call.1} parent=5 // pred_region
        %s187 = ssub.s32 %s18, 1
        // Predicated region
        $region13: #{tpu_custom_call.1} parent=11 // pred_check
          %p188 = pneg %p105
        $region14: #{tpu_custom_call.1} parent=11 // pred_check_branch
          %190 = sbr.rel (%p188) target = $region16
        $region15: #{tpu_custom_call.1} parent=11 // pred_region
          _
        $region16: #{tpu_custom_call.1} parent=11 // pred_fallthru
          _
        // Predicated region
        $region17: #{tpu_custom_call.1} parent=11 // pred_check
          %p191 = pneg %p126
        $region18: #{tpu_custom_call.1} parent=11 // pred_check_branch
          %193 = sbr.rel (%p191) target = $region20
        $region19: #{tpu_custom_call.1} parent=11 // pred_region
          %s195 = ssub.s32 1024, 1024
          %196 = vsyncadd [#allocation7], %s195
          %s197 = sshll.u32 [#allocation8], 4
          %s198 = int_to_ptr.vmem [resolvable:$true] %s197
          %203 = dma.hbm_to_vmem [thread:$0]  %s3, 1024, %s198, [#allocation7], 64, 64, 4
        $region20: #{tpu_custom_call.1} parent=11 // pred_fallthru
          _
        // Predicated region
        $region21: #{tpu_custom_call.1} parent=11 // pred_check
          %p204 = pneg %p147
        $region22: #{tpu_custom_call.1} parent=11 // pred_check_branch
          %206 = sbr.rel (%p204) target = $region24
        $region23: #{tpu_custom_call.1} parent=11 // pred_region
          _
        $region24: #{tpu_custom_call.1} parent=11 // pred_fallthru
          _
      $region12: #{tpu_custom_call.1} parent=5 // pred_fallthru
        _
      %p207 = scmp.lt.s32.totalorder %s18, 2
      // Predicated region
      $region25: #{tpu_custom_call.1} parent=5 // pred_check
        %p208 = pneg %p207
      $region26: #{tpu_custom_call.1} parent=5 // pred_check_branch
        %210 = sbr.rel (%p208) target = $region28
      $region27: #{tpu_custom_call.1} parent=5 // pred_region
        // Predicated region
        $region29: #{tpu_custom_call.1} parent=27 // pred_check
          %p211 = pneg %p52
        $region30: #{tpu_custom_call.1} parent=27 // pred_check_branch
          %213 = sbr.rel (%p211) target = $region32
        $region31: #{tpu_custom_call.1} parent=27 // pred_region
          %s214 = sand.u32 %s42, 1
          %s215 = scalar_lea.sflag [#allocation4], %s214
          %s216 = sand.u32 %s42, 1
          %s217 = smul.addr %s216, 8
          %s218 = scalar_lea.vmem [#allocation3], %s217
          %s220 = ssub.s32 128, 128
          %221 = vsyncadd %s215, %s220
          %s222 = smul.addr %s25, 2
          %s223 = sadd.s32 %s26, %s222
          %s224 = smul.addr %s223, 128
          %s225 = scalar_lea.hbm %s0, %s224
          %s227 = sshll.u32 %s218, 4
          %s228 = int_to_ptr.vmem [resolvable:$true] %s227
          %230 = dma.hbm_to_vmem [thread:$0]  %s225, 128, %s228, %s215
        $region32: #{tpu_custom_call.1} parent=27 // pred_fallthru
          _
        // Predicated region
        $region33: #{tpu_custom_call.1} parent=27 // pred_check
          %p231 = pneg %p78
        $region34: #{tpu_custom_call.1} parent=27 // pred_check_branch
          %233 = sbr.rel (%p231) target = $region36
        $region35: #{tpu_custom_call.1} parent=27 // pred_region
          %s234 = sand.u32 %s18, 1
          %s235 = scalar_lea.sflag [#allocation7], %s234
          %s236 = sand.u32 %s68, 1
          %s237 = smul.addr %s236, 64
          %s238 = scalar_lea.vmem [#allocation6], %s237
          %s239 = smul.u32 16, %s26
          %s241 = ssub.s32 1024, 1024
          %242 = vsyncadd %s235, %s241
          %s243 = smul.addr %s239, 64
          %s244 = scalar_lea.hbm %s1, %s243
          %s245 = sshll.u32 %s238, 4
          %s246 = int_to_ptr.vmem [resolvable:$true] %s245
          %251 = dma.hbm_to_vmem [thread:$0]  %s244, 1024, %s246, %s235, 64, 64, 4
        $region36: #{tpu_custom_call.1} parent=27 // pred_fallthru
          _
      $region28: #{tpu_custom_call.1} parent=5 // pred_fallthru
        _
      %p252 = scmp.le.s32.totalorder 1, %s18
      %p253 = scmp.lt.s32.totalorder %s18, 3
      %p254 = pnand %p252, %p253
      %p255 = pneg %p254
      // Predicated region
      $region37: #{tpu_custom_call.1} parent=5 // pred_check
        _
      $region38: #{tpu_custom_call.1} parent=5 // pred_check_branch
        %257 = sbr.rel (%p254) target = $region40
      $region39: #{tpu_custom_call.1} parent=5 // pred_region
        %s258 = ssub.s32 %s18, 1
        %s259 = sand.u32 %s45, 1
        %s260 = scalar_lea.sflag [#allocation4], %s259
        %s261 = sand.u32 %s45, 1
        %s262 = smul.addr %s261, 8
        %s263 = scalar_lea.vmem [#allocation3], %s262
        // Predicated region
        $region41: #{tpu_custom_call.1} parent=39 // pred_check
          %p264 = pneg %p58
        $region42: #{tpu_custom_call.1} parent=39 // pred_check_branch
          %266 = sbr.rel (%p264) target = $region44
        $region43: #{tpu_custom_call.1} parent=39 // pred_region
          %267 = dma.done %s260, 128
        $region44: #{tpu_custom_call.1} parent=39 // pred_fallthru
          _
        %s268 = sand.u32 %s23, 1
        %s269 = scalar_lea.sflag [#allocation7], %s268
        %s270 = sand.u32 %s71, 1
        %s271 = smul.addr %s270, 64
        %s272 = scalar_lea.vmem [#allocation6], %s271
        // Predicated region
        $region45: #{tpu_custom_call.1} parent=39 // pred_check
          %p273 = pneg %p84
        $region46: #{tpu_custom_call.1} parent=39 // pred_check_branch
          %275 = sbr.rel (%p273) target = $region48
        $region47: #{tpu_custom_call.1} parent=39 // pred_region
          %276 = dma.done %s269, 1024
        $region48: #{tpu_custom_call.1} parent=39 // pred_fallthru
          _
        // Predicated region
        $region49: #{tpu_custom_call.1} parent=39 // pred_check
          %p277 = pneg %p126
        $region50: #{tpu_custom_call.1} parent=39 // pred_check_branch
          %279 = sbr.rel (%p277) target = $region52
        $region51: #{tpu_custom_call.1} parent=39 // pred_region
          %280 = dma.done [#allocation7], 1024
        $region52: #{tpu_custom_call.1} parent=39 // pred_fallthru
          _
        %s281 = sand.u32 %s45, 1
        %s282 = scalar_lea.sflag [#allocation4], %s281
        %s283 = sand.u32 %s45, 1
        %s284 = smul.addr %s283, 8
        %s285 = scalar_lea.vmem [#allocation3], %s284
        %p286 = pneg %p58
        %p287 = pneg %p55
        %s288 = sand.u32 %s23, 1
        %s289 = scalar_lea.sflag [#allocation7], %s288
        %s290 = sand.u32 %s71, 1
        %s291 = smul.addr %s290, 64
        %s292 = scalar_lea.vmem [#allocation6], %s291
        %p293 = pneg %p84
        %p294 = pneg %p81
        %p295 = pneg %p105
        %p296 = pneg %p102
        %p297 = pneg %p126
        %p298 = pneg %p123
        %p299 = pneg %p147
        %p300 = pneg %p144
        %p301 = pneg %p173
        %p302 = pneg %p170
        %s303 = smul.u32 16, %s28
        %p305 = scmp.eq.s32.totalorder %s28, 0
        // Predicated region
        $region53: #{tpu_custom_call.1} parent=39 // pred_check
          %p306 = pneg %p305
        $region54: #{tpu_custom_call.1} parent=39 // pred_check_branch
          %308 = sbr.rel (%p306) target = $region56
        $region55: #{tpu_custom_call.1} parent=39 // pred_region
          %v309 = vld [vmem:[%s2] sm:$0x1]
          %v311 = vlaneseq
          %v312 = vshrl.u32 %v311, 7
          %v313 = vsub.s32 0, %v312
          %v314 = vrot.slane %v309, %v313
          %316 = vst [vmem:[#allocation2] sm:$0xff] %v314
        $region56: #{tpu_custom_call.1} parent=39 // pred_fallthru
          _
        %v317 = vld [vmem:[#allocation2] sm:$0xff]
        %v318 = vld [vmem:[%s263] sm:$0xff]
        %v319 = vpack.c.bf16 %v318, %v318
        %v320 = vld [vmem:[%s272] sm:$0xf]
        %v321 = vld [vmem:[%s272 + $0x4] sm:$0xf]
        %v322 = vld [vmem:[%s272 + $0x8] sm:$0xf]
        %v323 = vld [vmem:[%s272 + $0xc] sm:$0xf]
        %v324 = vld [vmem:[%s272 + $0x10] sm:$0xf]
        %v325 = vld [vmem:[%s272 + $0x14] sm:$0xf]
        %v326 = vld [vmem:[%s272 + $0x18] sm:$0xf]
        %v327 = vld [vmem:[%s272 + $0x1c] sm:$0xf]
        %v328 = vld [vmem:[%s272 + $0x20] sm:$0xf]
        %v329 = vld [vmem:[%s272 + $0x24] sm:$0xf]
        %v330 = vld [vmem:[%s272 + $0x28] sm:$0xf]
        %v331 = vld [vmem:[%s272 + $0x2c] sm:$0xf]
        %v332 = vld [vmem:[%s272 + $0x30] sm:$0xf]
        %v333 = vld [vmem:[%s272 + $0x34] sm:$0xf]
        %v334 = vld [vmem:[%s272 + $0x38] sm:$0xf]
        %v335 = vld [vmem:[%s272 + $0x3c] sm:$0xf]
        %v352 = vunpack.c.l.b16 %v320
        %v353 = vunpack.c.l.b16 %v321
        %v354 = vunpack.c.l.b16 %v322
        %v355 = vunpack.c.l.b16 %v323
        %v356 = vunpack.c.l.b16 %v324
        %v357 = vunpack.c.l.b16 %v325
        %v358 = vunpack.c.l.b16 %v326
        %v359 = vunpack.c.l.b16 %v327
        %v360 = vunpack.c.l.b16 %v328
        %v361 = vunpack.c.l.b16 %v329
        %v362 = vunpack.c.l.b16 %v330
        %v363 = vunpack.c.l.b16 %v331
        %v364 = vunpack.c.l.b16 %v332
        %v365 = vunpack.c.l.b16 %v333
        %v366 = vunpack.c.l.b16 %v334
        %v367 = vunpack.c.l.b16 %v335
        %v368 = vpack.c.b16 %v353, %v352
        %v369 = vpack.c.b16 %v355, %v354
        %v370 = vpack.c.b16 %v357, %v356
        %v371 = vpack.c.b16 %v359, %v358
        %v372 = vpack.c.b16 %v361, %v360
        %v373 = vpack.c.b16 %v363, %v362
        %v374 = vpack.c.b16 %v365, %v364
        %v375 = vpack.c.b16 %v367, %v366
        %384 = vmatprep.subr.bf16.mxu0 0
        %385 = vmatpush1.bf16.msra.mxu0 %v368
        %386 = vmatprep.subr.bf16.mxu0 0
        %387 = vmatpush1.bf16.msra.mxu0 %v369
        %388 = vmatprep.subr.bf16.mxu0 0
        %389 = vmatpush1.bf16.msra.mxu0 %v370
        %390 = vmatprep.subr.bf16.mxu0 0
        %391 = vmatpush1.bf16.msra.mxu0 %v371
        %392 = vmatprep.subr.bf16.mxu0 0
        %393 = vmatpush1.bf16.msra.mxu0 %v372
        %394 = vmatprep.subr.bf16.mxu0 0
        %395 = vmatpush1.bf16.msra.mxu0 %v373
        %396 = vmatprep.subr.bf16.mxu0 0
        %397 = vmatpush1.bf16.msra.mxu0 %v374
        %398 = vmatprep.subr.bf16.mxu0 0
        %399 = vmatpush1.bf16.msra.mxu0 %v375
        %400 = vmatprep.subr.bf16.mxu0 0
        %401 = vmatpush1.bf16.msra.mxu0 0
        %402 = vmatprep.subr.bf16.mxu0 0
        %403 = vmatpush1.bf16.msra.mxu0 0
        %404 = vmatprep.subr.bf16.mxu0 0
        %405 = vmatpush1.bf16.msra.mxu0 0
        %406 = vmatprep.subr.bf16.mxu0 0
        %407 = vmatpush1.bf16.msra.mxu0 0
        %408 = vmatprep.subr.bf16.mxu0 0
        %409 = vmatpush1.bf16.msra.mxu0 0
        %410 = vmatprep.subr.bf16.mxu0 0
        %411 = vmatpush1.bf16.msra.mxu0 0
        %412 = vmatprep.subr.bf16.mxu0 0
        %413 = vmatpush1.bf16.msra.mxu0 0
        %414 = vmatprep.subr.bf16.mxu0 0
        %415 = vmatpush1.bf16.msra.mxu0 0
        %416 = vmatprep.mubr.bf16.mxu0 0
        %417 = vmatmul.mubr.bf16.gmra.mrb[0].mxu0 %v319
        %v418 = vpop.f32.mrb[0].mxu0
        %v419 = vadd.f32 0.0, %v418
        %v420 = vpop.f32.mrb[0].mxu0
        %v421 = vpop.f32.mrb[0].mxu0
        %v422 = vpop.f32.mrb[0].mxu0
        %423 = vdwg.mxu0
        %v424 = vadd.f32 %v317, %v419
        %425 = vst [vmem:[#allocation2] sm:$0xff] %v424
        %p426 = scmp.eq.s32.totalorder %s28, 1
        // Predicated region
        $region57: #{tpu_custom_call.1} parent=39 // pred_check
          %p427 = pneg %p426
        $region58: #{tpu_custom_call.1} parent=39 // pred_check_branch
          %429 = sbr.rel (%p427) target = $region60
        $region59: #{tpu_custom_call.1} parent=39 // pred_region
          %v430 = vld [vmem:[#allocation2] sm:$0xff]
          %v431 = vmax.f32 %v430, 0.0
          %v432 = vpack.c.bf16 %v431, %v431
          %v433 = vld [vmem:[#allocation8] sm:$0xf]
          %v434 = vld [vmem:[#allocation8 + $0x4] sm:$0xf]
          %v435 = vld [vmem:[#allocation8 + $0x8] sm:$0xf]
          %v436 = vld [vmem:[#allocation8 + $0xc] sm:$0xf]
          %v437 = vld [vmem:[#allocation8 + $0x10] sm:$0xf]
          %v438 = vld [vmem:[#allocation8 + $0x14] sm:$0xf]
          %v439 = vld [vmem:[#allocation8 + $0x18] sm:$0xf]
          %v440 = vld [vmem:[#allocation8 + $0x1c] sm:$0xf]
          %v441 = vld [vmem:[#allocation8 + $0x20] sm:$0xf]
          %v442 = vld [vmem:[#allocation8 + $0x24] sm:$0xf]
          %v443 = vld [vmem:[#allocation8 + $0x28] sm:$0xf]
          %v444 = vld [vmem:[#allocation8 + $0x2c] sm:$0xf]
          %v445 = vld [vmem:[#allocation8 + $0x30] sm:$0xf]
          %v446 = vld [vmem:[#allocation8 + $0x34] sm:$0xf]
          %v447 = vld [vmem:[#allocation8 + $0x38] sm:$0xf]
          %v448 = vld [vmem:[#allocation8 + $0x3c] sm:$0xf]
          %v449 = vld [vmem:[%s4] sm:$0x1]
          %v451 = vlaneseq
          %v452 = vshrl.u32 %v451, 7
          %v453 = vsub.s32 0, %v452
          %v454 = vrot.slane %v449, %v453
          %v472 = vunpack.c.l.b16 %v433
          %v473 = vunpack.c.l.b16 %v434
          %v474 = vunpack.c.l.b16 %v435
          %v475 = vunpack.c.l.b16 %v436
          %v476 = vunpack.c.l.b16 %v437
          %v477 = vunpack.c.l.b16 %v438
          %v478 = vunpack.c.l.b16 %v439
          %v479 = vunpack.c.l.b16 %v440
          %v480 = vunpack.c.l.b16 %v441
          %v481 = vunpack.c.l.b16 %v442
          %v482 = vunpack.c.l.b16 %v443
          %v483 = vunpack.c.l.b16 %v444
          %v484 = vunpack.c.l.b16 %v445
          %v485 = vunpack.c.l.b16 %v446
          %v486 = vunpack.c.l.b16 %v447
          %v487 = vunpack.c.l.b16 %v448
          %v488 = vpack.c.b16 %v473, %v472
          %v489 = vpack.c.b16 %v475, %v474
          %v490 = vpack.c.b16 %v477, %v476
          %v491 = vpack.c.b16 %v479, %v478
          %v492 = vpack.c.b16 %v481, %v480
          %v493 = vpack.c.b16 %v483, %v482
          %v494 = vpack.c.b16 %v485, %v484
          %v495 = vpack.c.b16 %v487, %v486
          %504 = vmatprep.subr.bf16.mxu0 0
          %505 = vmatpush1.bf16.msra.mxu0 %v488
          %506 = vmatprep.subr.bf16.mxu0 0
          %507 = vmatpush1.bf16.msra.mxu0 %v489
          %508 = vmatprep.subr.bf16.mxu0 0
          %509 = vmatpush1.bf16.msra.mxu0 %v490
          %510 = vmatprep.subr.bf16.mxu0 0
          %511 = vmatpush1.bf16.msra.mxu0 %v491
          %512 = vmatprep.subr.bf16.mxu0 0
          %513 = vmatpush1.bf16.msra.mxu0 %v492
          %514 = vmatprep.subr.bf16.mxu0 0
          %515 = vmatpush1.bf16.msra.mxu0 %v493
          %516 = vmatprep.subr.bf16.mxu0 0
          %517 = vmatpush1.bf16.msra.mxu0 %v494
          %518 = vmatprep.subr.bf16.mxu0 0
          %519 = vmatpush1.bf16.msra.mxu0 %v495
          %520 = vmatprep.subr.bf16.mxu0 0
          %521 = vmatpush1.bf16.msra.mxu0 0
          %522 = vmatprep.subr.bf16.mxu0 0
          %523 = vmatpush1.bf16.msra.mxu0 0
          %524 = vmatprep.subr.bf16.mxu0 0
          %525 = vmatpush1.bf16.msra.mxu0 0
          %526 = vmatprep.subr.bf16.mxu0 0
          %527 = vmatpush1.bf16.msra.mxu0 0
          %528 = vmatprep.subr.bf16.mxu0 0
          %529 = vmatpush1.bf16.msra.mxu0 0
          %530 = vmatprep.subr.bf16.mxu0 0
          %531 = vmatpush1.bf16.msra.mxu0 0
          %532 = vmatprep.subr.bf16.mxu0 0
          %533 = vmatpush1.bf16.msra.mxu0 0
          %534 = vmatprep.subr.bf16.mxu0 0
          %535 = vmatpush1.bf16.msra.mxu0 0
          %536 = vmatprep.mubr.bf16.mxu0 0
          %537 = vmatmul.mubr.bf16.gmra.mrb[0].mxu0 %v432
          %v538 = vpop.f32.mrb[0].mxu0
          %v539 = vadd.f32 %v454, %v538
          %v540 = vpop.f32.mrb[0].mxu0
          %v541 = vpop.f32.mrb[0].mxu0
          %v542 = vpop.f32.mrb[0].mxu0
          %543 = vdwg.mxu0
          %v544 = vmax.f32 %v539, 0.0
          %545 = vst [vmem:[#allocation9] sm:$0xff] %v544
        $region60: #{tpu_custom_call.1} parent=39 // pred_fallthru
          _
        // Predicated region
        $region61: #{tpu_custom_call.1} parent=39 // pred_check
          %p546 = pneg %p170
        $region62: #{tpu_custom_call.1} parent=39 // pred_check_branch
          %548 = sbr.rel (%p546) target = $region64
        $region63: #{tpu_custom_call.1} parent=39 // pred_region
          %s550 = ssub.s32 128, 128
          %551 = vsyncadd [#allocation5], %s550
          %s552 = smul.addr %s27, 128
          %s553 = scalar_lea.hbm %s5, %s552
          %s555 = sshll.u32 [#allocation9], 4
          %s556 = int_to_ptr.vmem [resolvable:$true] %s555
          %558 = dma.vmem_to_hbm [thread:$0]  %s556, 128, %s553, [#allocation5]
        $region64: #{tpu_custom_call.1} parent=39 // pred_fallthru
          _
        // Predicated region
        $region65: #{tpu_custom_call.1} parent=39 // pred_check
          %p559 = pneg %p170
        $region66: #{tpu_custom_call.1} parent=39 // pred_check_branch
          %561 = sbr.rel (%p559) target = $region68
        $region67: #{tpu_custom_call.1} parent=39 // pred_region
          %562 = dma.done [#allocation5], 128
        $region68: #{tpu_custom_call.1} parent=39 // pred_fallthru
          _
      $region40: #{tpu_custom_call.1} parent=5 // pred_fallthru
        _
      %p563 = scmp.le.s32.totalorder 2, %s18
      // Predicated region
      $region69: #{tpu_custom_call.1} parent=5 // pred_check
        %p564 = pneg %p563
      $region70: #{tpu_custom_call.1} parent=5 // pred_check_branch
        %566 = sbr.rel (%p564) target = $region72
      $region71: #{tpu_custom_call.1} parent=5 // pred_region
        %s567 = ssub.s32 %s18, 2
      $region72: #{tpu_custom_call.1} parent=5 // pred_fallthru
        _
    $region6: #{tpu_custom_call.1} parent=1 // loop_footer
      %s22 = sadd.s32 1, %s18
    $region7: #{tpu_custom_call.1} parent=1 // loop_footer_branch
      %17 = sbr.rel target = $region3
    $region8: #{tpu_custom_call.1} parent=1 // loop_exit
      _
    %568 = vsyncpa [#allocation4], 1
    %s569 = scalar_lea.sflag [#allocation4], 1
    %570 = vsyncpa %s569, 1
    %571 = vsyncpa [#allocation7], 1
    %s572 = scalar_lea.sflag [#allocation7], 1
    %573 = vsyncpa %s572, 1
    %574 = vsyncpa [#allocation5], 1
    %s575 = scalar_lea.sflag [#allocation5], 1
    %576 = vsyncpa %s575, 1

</llo_original>
